<compile_context>
chip_gen: v7x
topology: tpu7x:2x2x1
jax: 0.10.0
libtpu: 0.0.40
codegen_flags: <defaults>
</compile_context>

<pallas_src>
import jax
import jax.numpy as jnp
from jax.experimental import pallas as pl
from jax.experimental.pallas import tpu as pltpu

_TARGET_TILE_BYTES = 8 * 1024 * 1024          # ~8 MiB per x tile
_VMEM_FOOTPRINT_BUDGET = 36 * 1024 * 1024     # double-buffered footprint cap
                                              # (limit stays < ~48 MiB -> safe
                                              #  headroom under v7x's 64 MiB)


def _add_seq_emb_kernel(x_ref, emb_ref, o_ref):
    # Broadcast add over the leading (batch-tile) dim.  jnp promotion handles
    # mixed dtypes (e.g. bf16 activations + f32 parameter -> f32), then cast
    # to the output dtype.  Single VPU add per tile; purely HBM-bound.
    o_ref[...] = (x_ref[...] + emb_ref[...]).astype(o_ref.dtype)


def _round_up(x: int, m: int) -> int:
    return ((x + m - 1) // m) * m


def sequence_embedding(x: jax.Array, seq_embedding: jax.Array,
                       *, donate_x: bool = False) -> jax.Array:
    """x: (B, S, D); seq_embedding: (1, S, D) (module uses S == 64)."""
    B, S, D = x.shape
    assert seq_embedding.ndim == 3 and seq_embedding.shape[0] == 1
    assert seq_embedding.shape[1] == S and seq_embedding.shape[2] == D

    xi = jnp.dtype(x.dtype).itemsize
    ei = jnp.dtype(seq_embedding.dtype).itemsize
    out_dtype = jnp.result_type(x.dtype, seq_embedding.dtype)
    oi = jnp.dtype(out_dtype).itemsize

    N = S * D                                  # elements per batch row
    stream_b = 2 * N * (xi + oi)               # dbl-buffered in + out per row
    emb_vmem = 2 * N * ei                      # resident embedding (2 bufs)

    # ---- choose tile_d: only split D in the huge-D corner ----------------
    if stream_b + emb_vmem <= _VMEM_FOOTPRINT_BUDGET:
        tile_d = D
    else:
        # Even a single batch element overflows the budget -> tile the last
        # dim in 128-aligned chunks (D is guaranteed >= 128 here).
        per_d = S * (2 * (xi + oi) + 2 * ei)
        tile_d = max(128, (_VMEM_FOOTPRINT_BUDGET // per_d) // 128 * 128)
        tile_d = min(tile_d, D)

    # ---- choose tile_b ----------------------------------------------------
    if tile_d == D:
        tile_b_tgt = max(1, _TARGET_TILE_BYTES // (N * xi))
        tile_b_vmem = max(1, (_VMEM_FOOTPRINT_BUDGET - emb_vmem) // stream_b)
        tile_b_max = max(1, min(B, tile_b_tgt, tile_b_vmem))
        nb = pl.cdiv(B, tile_b_max)
        tile_b = pl.cdiv(B, nb)                # balanced tiles, no padding
    else:
        tile_b = 1
        nb = B
    nd = pl.cdiv(D, tile_d)

    # ---- lane-density: flatten to (B, S*D) when D is not 128-aligned ------
    flatten = (tile_d == D) and (D % 128 != 0)
    if flatten:
        # 2-D block second-minor dim must be a multiple of 8 or the full B.
        tb = tile_b if (tile_b == B or tile_b % 8 == 0) else min(B, _round_up(tile_b, 8))
        if 2 * tb * N * (xi + oi) + emb_vmem <= _VMEM_FOOTPRINT_BUDGET:
            tile_b = tb
            nb = pl.cdiv(B, tile_b)
        else:
            flatten = False                    # keep 3-D blocks (any tile_b)

    # ---- build specs -------------------------------------------------------
    if flatten:
        x_in = x.reshape(B, N)                 # free (contiguous) reshape
        emb_in = seq_embedding.reshape(1, N)
        grid = (nb,)
        in_specs = [
            pl.BlockSpec((tile_b, N), lambda b: (b, 0)),
            pl.BlockSpec((1, N), lambda b: (0, 0)),   # constant -> resident
        ]
        out_specs = pl.BlockSpec((tile_b, N), lambda b: (b, 0))
        out_shape = jax.ShapeDtypeStruct((B, N), out_dtype)
        dims = ("parallel",)
        footprint = 2 * tile_b * N * (xi + oi) + emb_vmem
    else:
        x_in = x
        emb_in = seq_embedding
        # d outer / b inner: the embedding block index is constant across the
        # inner batch axis, so it stays VMEM-resident (no per-step re-DMA).
        grid = (nd, nb)
        in_specs = [
            pl.BlockSpec((tile_b, S, tile_d), lambda d, b: (b, 0, d)),
            pl.BlockSpec((1, S, tile_d), lambda d, b: (0, 0, d)),
        ]
        out_specs = pl.BlockSpec((tile_b, S, tile_d), lambda d, b: (b, 0, d))
        out_shape = jax.ShapeDtypeStruct((B, S, D), out_dtype)
        dims = ("parallel", "parallel")
        footprint = 2 * tile_b * S * tile_d * (xi + oi) + 2 * S * tile_d * ei

    # VMEM limit from the actual footprint (+25% / >=2 MiB slack), not a
    # blanket 64 MiB ceiling -> always leaves headroom on v7x, and always
    # covers v5e's 16 MiB default scoped-VMEM limit when tiles are large.
    vmem_limit = int(footprint + max(footprint // 4, 2 * 1024 * 1024))

    cost = pl.CostEstimate(
        flops=B * S * D,
        transcendentals=0,
        bytes_accessed=B * N * xi + B * N * oi + N * ei,
    )

    ioa = {0: 0} if (donate_x and out_dtype == x.dtype) else {}

    out = pl.pallas_call(
        _add_seq_emb_kernel,
        out_shape=out_shape,
        grid_spec=pltpu.PrefetchScalarGridSpec(
            num_scalar_prefetch=0,
            grid=grid,
            in_specs=in_specs,
            out_specs=out_specs,
        ),
        compiler_params=pltpu.CompilerParams(
            dimension_semantics=dims,
            vmem_limit_bytes=vmem_limit,
        ),
        cost_estimate=cost,
        input_output_aliases=ioa,
    )(x_in, emb_in)

    return out.reshape(B, S, D) if flatten else out


if __name__ == "__main__":
    # Shapes consistent with the module: seq_len must be 64 (the parameter is
    # hard-coded to 64 rows), emb dim = 128 (lane-dense), batch = 2.
    B, S, D = 2, 64, 128

    key = jax.random.PRNGKey(0)
    kx, ke = jax.random.split(key)
    x = jax.random.normal(kx, (B, S, D), dtype=jnp.float32)
    # nn.Parameter(torch.zeros(1, 64, dim)) is all-zeros at init; use a
    # deterministic random value so the add is non-trivial to verify.
    seq_emb = jax.random.normal(ke, (1, 64, D), dtype=jnp.float32)

    out = sequence_embedding(x, seq_emb)
    out = jax.block_until_ready(out)

    ref = x + seq_emb  # pure-JAX reference (same broadcasting as PyTorch)
    assert out.shape == (B, S, D)
    assert out.dtype == jnp.result_type(x.dtype, seq_emb.dtype)
    assert jnp.allclose(out, ref, atol=1e-6), "mismatch vs reference"
    print("KERNEL_OK")
</pallas_src>

<mosaic_0001>
module attributes {stable_mosaic.version = 11 : i64} {
  func.func @_add_seq_emb_kernel(%arg0: i32, %arg1: i32, %arg2: memref<2x64x128xf32, #tpu.memory_space<vmem>>, %arg3: memref<1x64x128xf32, #tpu.memory_space<vmem>>, %arg4: memref<2x64x128xf32, #tpu.memory_space<vmem>>) attributes {dimension_semantics = [#tpu.dimension_semantics<parallel>, #tpu.dimension_semantics<parallel>], iteration_bounds = array<i64: 1, 1>, scalar_prefetch = 0 : i64, scratch_operands = 0 : i64, tpu.core_type = #tpu.core_type<tc>, window_params = [{transform_indices = @transform_0, window_bounds = array<i64: 2, 64, 128>}, {transform_indices = @transform_1, window_bounds = array<i64: 1, 64, 128>}, {transform_indices = @transform_2, window_bounds = array<i64: 2, 64, 128>}]} {
    %c0 = arith.constant 0 : index
    %c0_0 = arith.constant 0 : index
    %c0_1 = arith.constant 0 : index
    %0 = vector.load %arg2[%c0, %c0_0, %c0_1] : memref<2x64x128xf32, #tpu.memory_space<vmem>>, vector<2x64x128xf32>
    %c0_2 = arith.constant 0 : index
    %c0_3 = arith.constant 0 : index
    %c0_4 = arith.constant 0 : index
    %1 = vector.load %arg3[%c0_2, %c0_3, %c0_4] : memref<1x64x128xf32, #tpu.memory_space<vmem>>, vector<1x64x128xf32>
    %2 = vector.broadcast %1 : vector<1x64x128xf32> to vector<2x64x128xf32>
    %3 = arith.addf %0, %2 : vector<2x64x128xf32>
    %c0_5 = arith.constant 0 : index
    %c0_6 = arith.constant 0 : index
    %c0_7 = arith.constant 0 : index
    %4 = vector.load %arg4[%c0_5, %c0_6, %c0_7] : memref<2x64x128xf32, #tpu.memory_space<vmem>>, vector<2x64x128xf32>
    tpu.vector_store %arg4[%c0_5, %c0_6, %c0_7], %3 {strides = array<i32>} : memref<2x64x128xf32, #tpu.memory_space<vmem>>, vector<2x64x128xf32>,
    return
  }
  func.func @transform_0(%arg0: i32, %arg1: i32) -> (i32, i32, i32) {
    %c0_i32 = arith.constant 0 : i32
    %c0_i32_0 = arith.constant 0 : i32
    return %arg1, %c0_i32, %arg0 : i32, i32, i32
  }
  func.func @transform_1(%arg0: i32, %arg1: i32) -> (i32, i32, i32) {
    %c0_i32 = arith.constant 0 : i32
    %c0_i32_0 = arith.constant 0 : i32
    %c0_i32_1 = arith.constant 0 : i32
    return %c0_i32, %c0_i32_0, %arg0 : i32, i32, i32
  }
  func.func @transform_2(%arg0: i32, %arg1: i32) -> (i32, i32, i32) {
    %c0_i32 = arith.constant 0 : i32
    %c0_i32_0 = arith.constant 0 : i32
    return %arg1, %c0_i32, %arg0 : i32, i32, i32
  }
}

</mosaic_0001>

<llo_original>
// kernel: tpu_custom_call.1
$region0: #{tpu_custom_call.1}
  #allocation0 [shape = 'u32[]', space=smem, size = 0x4, offset = 0x4, fixed_abs, tag = 'smem constant byte address 0x4 - core index']
  #allocation1 [shape = 'u32[144,128]{1,0:T(1,128)}', space=vmem, size = 0x12000, scoped, tag = 'internal scratch']
  %s0 = inlined_call_operand.hbm [shape: f32[2,64,128], index: 0, kind: input, shape index: {}]
  %s1 = inlined_call_operand.hbm [shape: f32[1,64,128], index: 1, kind: input, shape index: {}]
  %s2 = inlined_call_operand.hbm [shape: f32[2,64,128], index: 2, kind: output, shape index: {}]
  %s3 = sld [smem:[#allocation0]]
  $region26: #{tpu_custom_call.1} parent=0
    _
  %s5 = ssub.s32 1, %s3
  %s6 = scalar_select 0, %s5, %s3
  $region1: #{tpu_custom_call.1} parent=0
    #allocation2 [shape = 'u8[65536]{0}', space=vmem, size = 0x10000, scoped, tag = 'input window, operand 0, single buffered']
    #allocation3 [shape = 's32[1]{0}', space=sflag, size = 0x4, scoped, tag = 'scoped memory for tpu_custom_call.1']
    #allocation4 [shape = 's32[1]{0}', space=sflag, size = 0x4, scoped, tag = 'scoped memory for tpu_custom_call.1']
    #allocation5 [shape = 'u8[32768]{0}', space=vmem, size = 0x8000, scoped, tag = 'input window, operand 1, single buffered']
    #allocation6 [shape = 's32[1]{0}', space=sflag, size = 0x4, scoped, tag = 'scoped memory for tpu_custom_call.1']
    #allocation7 [shape = 'u8[65536]{0}', space=vmem, size = 0x10000, scoped, tag = 'output window, operand 0, single buffered']
    %7 = vsyncpa [#allocation3], 0
    %8 = vsyncpa [#allocation6], 0
    %9 = vsyncpa [#allocation4], 0
    // Predicated region
    $region2: #{tpu_custom_call.1} parent=1 // pred_check
      _
    $region3: #{tpu_custom_call.1} parent=1 // pred_check_branch
      %11 = sbr.rel (0) target = $region5
    $region4: #{tpu_custom_call.1} parent=1 // pred_region
      %s13 = ssub.s32 2048, 2048
      %14 = vsyncadd [#allocation3], %s13
      %s15 = sshll.u32 [#allocation2], 4
      %s16 = int_to_ptr.vmem [resolvable:$true] %s15
      %21 = dma.hbm_to_vmem [thread:$0]  %s0, 2048, %s16, [#allocation3], 128, 128, 8
    $region5: #{tpu_custom_call.1} parent=1 // pred_fallthru
      _
    // Predicated region
    $region6: #{tpu_custom_call.1} parent=1 // pred_check
      _
    $region7: #{tpu_custom_call.1} parent=1 // pred_check_branch
      %23 = sbr.rel (0) target = $region9
    $region8: #{tpu_custom_call.1} parent=1 // pred_region
      %s25 = ssub.s32 1024, 1024
      %26 = vsyncadd [#allocation6], %s25
      %s27 = sshll.u32 [#allocation5], 4
      %s28 = int_to_ptr.vmem [resolvable:$true] %s27
      %33 = dma.hbm_to_vmem [thread:$0]  %s1, 1024, %s28, [#allocation6], 128, 128, 8
    $region9: #{tpu_custom_call.1} parent=1 // pred_fallthru
      _
    // Predicated region
    $region10: #{tpu_custom_call.1} parent=1 // pred_check
      _
    $region11: #{tpu_custom_call.1} parent=1 // pred_check_branch
      %35 = sbr.rel (0) target = $region13
    $region12: #{tpu_custom_call.1} parent=1 // pred_region
      %36 = dma.done [#allocation3], 2048
    $region13: #{tpu_custom_call.1} parent=1 // pred_fallthru
      _
    // Predicated region
    $region14: #{tpu_custom_call.1} parent=1 // pred_check
      _
    $region15: #{tpu_custom_call.1} parent=1 // pred_check_branch
      %38 = sbr.rel (0) target = $region17
    $region16: #{tpu_custom_call.1} parent=1 // pred_region
      %39 = dma.done [#allocation6], 1024
    $region17: #{tpu_custom_call.1} parent=1 // pred_fallthru
      _
    %v40 = vld [vmem:[#allocation2] sm:$0xff]
    %v41 = vld [vmem:[#allocation2 + $0x8] sm:$0xff]
    %v42 = vld [vmem:[#allocation2 + $0x10] sm:$0xff]
    %v43 = vld [vmem:[#allocation2 + $0x18] sm:$0xff]
    %v44 = vld [vmem:[#allocation2 + $0x20] sm:$0xff]
    %v45 = vld [vmem:[#allocation2 + $0x28] sm:$0xff]
    %v46 = vld [vmem:[#allocation2 + $0x30] sm:$0xff]
    %v47 = vld [vmem:[#allocation2 + $0x38] sm:$0xff]
    %v48 = vld [vmem:[#allocation2 + $0x40] sm:$0xff]
    %v49 = vld [vmem:[#allocation2 + $0x48] sm:$0xff]
    %v50 = vld [vmem:[#allocation2 + $0x50] sm:$0xff]
    %v51 = vld [vmem:[#allocation2 + $0x58] sm:$0xff]
    %v52 = vld [vmem:[#allocation2 + $0x60] sm:$0xff]
    %v53 = vld [vmem:[#allocation2 + $0x68] sm:$0xff]
    %v54 = vld [vmem:[#allocation2 + $0x70] sm:$0xff]
    %v55 = vld [vmem:[#allocation2 + $0x78] sm:$0xff]
    %v56 = vld [vmem:[#allocation5] sm:$0xff]
    %v57 = vld [vmem:[#allocation5 + $0x8] sm:$0xff]
    %v58 = vld [vmem:[#allocation5 + $0x10] sm:$0xff]
    %v59 = vld [vmem:[#allocation5 + $0x18] sm:$0xff]
    %v60 = vld [vmem:[#allocation5 + $0x20] sm:$0xff]
    %v61 = vld [vmem:[#allocation5 + $0x28] sm:$0xff]
    %v62 = vld [vmem:[#allocation5 + $0x30] sm:$0xff]
    %v63 = vld [vmem:[#allocation5 + $0x38] sm:$0xff]
    %v64 = vadd.f32 %v40, %v56
    %v65 = vadd.f32 %v41, %v57
    %v66 = vadd.f32 %v42, %v58
    %v67 = vadd.f32 %v43, %v59
    %v68 = vadd.f32 %v44, %v60
    %v69 = vadd.f32 %v45, %v61
    %v70 = vadd.f32 %v46, %v62
    %v71 = vadd.f32 %v47, %v63
    %v72 = vadd.f32 %v48, %v56
    %v73 = vadd.f32 %v49, %v57
    %v74 = vadd.f32 %v50, %v58
    %v75 = vadd.f32 %v51, %v59
    %v76 = vadd.f32 %v52, %v60
    %v77 = vadd.f32 %v53, %v61
    %v78 = vadd.f32 %v54, %v62
    %v79 = vadd.f32 %v55, %v63
    %80 = vst [vmem:[#allocation7] sm:$0xff] %v64
    %81 = vst [vmem:[#allocation7 + $0x8] sm:$0xff] %v65
    %82 = vst [vmem:[#allocation7 + $0x10] sm:$0xff] %v66
    %83 = vst [vmem:[#allocation7 + $0x18] sm:$0xff] %v67
    %84 = vst [vmem:[#allocation7 + $0x20] sm:$0xff] %v68
    %85 = vst [vmem:[#allocation7 + $0x28] sm:$0xff] %v69
    %86 = vst [vmem:[#allocation7 + $0x30] sm:$0xff] %v70
    %87 = vst [vmem:[#allocation7 + $0x38] sm:$0xff] %v71
    %88 = vst [vmem:[#allocation7 + $0x40] sm:$0xff] %v72
    %89 = vst [vmem:[#allocation7 + $0x48] sm:$0xff] %v73
    %90 = vst [vmem:[#allocation7 + $0x50] sm:$0xff] %v74
    %91 = vst [vmem:[#allocation7 + $0x58] sm:$0xff] %v75
    %92 = vst [vmem:[#allocation7 + $0x60] sm:$0xff] %v76
    %93 = vst [vmem:[#allocation7 + $0x68] sm:$0xff] %v77
    %94 = vst [vmem:[#allocation7 + $0x70] sm:$0xff] %v78
    %95 = vst [vmem:[#allocation7 + $0x78] sm:$0xff] %v79
    // Predicated region
    $region18: #{tpu_custom_call.1} parent=1 // pred_check
      _
    $region19: #{tpu_custom_call.1} parent=1 // pred_check_branch
      %97 = sbr.rel (0) target = $region21
    $region20: #{tpu_custom_call.1} parent=1 // pred_region
      %s99 = ssub.s32 2048, 2048
      %100 = vsyncadd [#allocation4], %s99
      %s101 = sshll.u32 [#allocation7], 4
      %s102 = int_to_ptr.vmem [resolvable:$true] %s101
      %107 = dma.vmem_to_hbm [thread:$0]  %s102, 2048, %s2, [#allocation4], 128, 128, 8
    $region21: #{tpu_custom_call.1} parent=1 // pred_fallthru
      _
    // Predicated region
    $region22: #{tpu_custom_call.1} parent=1 // pred_check
      _
    $region23: #{tpu_custom_call.1} parent=1 // pred_check_branch
      %109 = sbr.rel (0) target = $region25
    $region24: #{tpu_custom_call.1} parent=1 // pred_region
      %110 = dma.done [#allocation4], 2048
    $region25: #{tpu_custom_call.1} parent=1 // pred_fallthru
      _
    %111 = vsyncpa [#allocation3], 1
    %112 = vsyncpa [#allocation6], 1
    %113 = vsyncpa [#allocation4], 1

</llo_original>
